<compile_context>
chip_gen: v7x
topology: tpu7x:2x2x1
jax: 0.10.0
libtpu: 0.0.40
codegen_flags: <defaults>
</compile_context>

<pallas_src>
import jax
import jax.numpy as jnp
from jax.experimental import pallas as pl
from jax.experimental.pallas import tpu as pltpu


LANE = 128        # vreg lane width: pad the action dim to this
SMALL_B = 512     # at or below this batch size, use the single-block path
MAX_BLOCK_B = 2048  # upper bound on the batch tile for the gridded path


def _round_up(n, m):
    return ((n + m - 1) // m) * m


def _cdiv(a, b):
    return (a + b - 1) // b


def dqn_kernel(x_ref, w1_ref, b1_ref, w2_ref, b2_ref, out_ref):
    # In-kernel cast to bf16 (MXU input dtype); f32 accumulation throughout.
    x = x_ref[...].astype(jnp.bfloat16)
    # fc1: (B, S) @ (S, H) -> f32, + bias, ReLU (f32 on the VPU)
    h = jnp.dot(x, w1_ref[...], preferred_element_type=jnp.float32)
    h = jnp.maximum(h + b1_ref[...], 0.0)
    # fc2: (B, H) @ (H, A_pad) -> f32, + bias
    out = jnp.dot(h.astype(jnp.bfloat16), w2_ref[...],
                  preferred_element_type=jnp.float32)
    out_ref[...] = (out + b2_ref[...]).astype(out_ref.dtype)


def init_dqn_params(key, num_states, num_actions, fc1_nodes=256):
    """Deterministic init mimicking nn.Linear's uniform(-1/sqrt(fan_in), ...)."""
    k1, k2, k3, k4 = jax.random.split(key, 4)
    bound1 = 1.0 / jnp.sqrt(num_states)
    bound2 = 1.0 / jnp.sqrt(fc1_nodes)
    w1 = jax.random.uniform(k1, (num_states, fc1_nodes), jnp.float32, -bound1, bound1)
    b1 = jax.random.uniform(k2, (1, fc1_nodes), jnp.float32, -bound1, bound1)
    w2 = jax.random.uniform(k3, (fc1_nodes, num_actions), jnp.float32, -bound2, bound2)
    b2 = jax.random.uniform(k4, (1, num_actions), jnp.float32, -bound2, bound2)
    return w1, b1, w2, b2


def prepare_params(w1, b1, w2, b2):
    """Cast weights to bf16 and zero-pad the action dim to a 128-lane tile."""
    S, H = w1.shape
    A = w2.shape[1]
    A_pad = _round_up(A, LANE)
    w2_p = jnp.zeros((H, A_pad), jnp.float32).at[:, :A].set(w2)
    b2_p = jnp.zeros((1, A_pad), jnp.float32).at[:, :A].set(b2.reshape(1, A))
    return dict(
        w1=w1.astype(jnp.bfloat16),
        b1=b1.reshape(1, H).astype(jnp.float32),
        w2=w2_p.astype(jnp.bfloat16),
        b2=b2_p,
        num_actions=A,
    )


def _cost(B, S, H, A_pad, out_bytes):
    return pl.CostEstimate(
        flops=2 * B * (S * H + H * A_pad),
        transcendentals=0,
        bytes_accessed=(B * S * 4            # x (f32 in)
                        + S * H * 2          # w1 (bf16)
                        + H * A_pad * 2      # w2 (bf16)
                        + H * 4 + A_pad * 4  # biases (f32)
                        + B * A_pad * out_bytes),
    )


def dqn_forward(x, params):
    """x: (B, S) f32; params from prepare_params. Returns (B, num_actions) f32."""
    w1, b1, w2, b2 = params["w1"], params["b1"], params["w2"], params["b2"]
    A = params["num_actions"]
    B, S = x.shape
    H = w1.shape[1]
    A_pad = w2.shape[1]

    x = x.astype(jnp.float32)  # pass f32; bf16 cast happens inside the kernel

    if B <= SMALL_B:
        # Small batch: single VMEM-resident block, no grid, no padding of B
        # (full-array BlockSpec satisfies the (8,128) rule). Output kept f32 —
        # the writeback is tiny at this size.
        out = pl.pallas_call(
            dqn_kernel,
            out_shape=jax.ShapeDtypeStruct((B, A_pad), jnp.float32),
            in_specs=[pl.BlockSpec(memory_space=pltpu.MemorySpace.VMEM)] * 5,
            out_specs=pl.BlockSpec(memory_space=pltpu.MemorySpace.VMEM),
            cost_estimate=_cost(B, S, H, A_pad, out_bytes=4),
        )(x, w1, b1, w2, b2)
        return out[:, :A]

    # Large batch: tile the batch on a "parallel" grid axis. Keep >= 2 grid
    # steps so v7x's two TensorCores both get work, with tiles up to
    # MAX_BLOCK_B rows for HBM-roofline efficiency and step amortization.
    num_blocks = max(2, _cdiv(B, MAX_BLOCK_B))
    block_b = _round_up(_cdiv(B, num_blocks), LANE)
    B_pad = block_b * num_blocks
    if B_pad != B:
        x = jnp.zeros((B_pad, S), jnp.float32).at[:B].set(x)

    out = pl.pallas_call(
        dqn_kernel,
        # bf16 writeback: the A-dim is padded 8->128 lanes, so halving the
        # output stream is the biggest HBM saving at large B.
        out_shape=jax.ShapeDtypeStruct((B_pad, A_pad), jnp.bfloat16),
        grid=(num_blocks,),
        in_specs=[
            pl.BlockSpec((block_b, S), lambda i: (i, 0)),
            pl.BlockSpec((S, H), lambda i: (0, 0)),      # weights: resident
            pl.BlockSpec((1, H), lambda i: (0, 0)),
            pl.BlockSpec((H, A_pad), lambda i: (0, 0)),
            pl.BlockSpec((1, A_pad), lambda i: (0, 0)),
        ],
        out_specs=pl.BlockSpec((block_b, A_pad), lambda i: (i, 0)),
        compiler_params=pltpu.CompilerParams(
            dimension_semantics=("parallel",)),
        cost_estimate=_cost(B_pad, S, H, A_pad, out_bytes=2),
    )(x, w1, b1, w2, b2)

    return out[:B, :A].astype(jnp.float32)


def dqn_reference(x, w1, b1, w2, b2):
    """Pure-JAX reference using the same bf16-weight / f32-accumulate recipe."""
    xb = x.astype(jnp.bfloat16)
    h = jnp.dot(xb, w1.astype(jnp.bfloat16), preferred_element_type=jnp.float32)
    h = jnp.maximum(h + b1.reshape(1, -1), 0.0)
    out = jnp.dot(h.astype(jnp.bfloat16), w2.astype(jnp.bfloat16),
                  preferred_element_type=jnp.float32)
    return out + b2.reshape(1, -1)


if __name__ == "__main__":
    num_states = 16
    num_actions = 8
    fc1_nodes = 256
    batch = 2

    key = jax.random.PRNGKey(0)
    kx, kp, kx2 = jax.random.split(key, 3)
    x = jax.random.normal(kx, (batch, num_states), jnp.float32)
    w1, b1, w2, b2 = init_dqn_params(kp, num_states, num_actions, fc1_nodes)
    params = prepare_params(w1, b1, w2, b2)

    # Small-batch (no-grid, f32-out) path.
    out = jax.block_until_ready(dqn_forward(x, params))
    assert out.shape == (batch, num_actions)
    ref = dqn_reference(x, w1, b1, w2, b2)
    assert jnp.allclose(out, ref, atol=2e-3, rtol=2e-3), float(
        jnp.max(jnp.abs(out - ref)))

    # Large-batch (parallel-grid, bf16-writeback) path; B=1000 also exercises
    # the batch padding to a block multiple.
    x_big = jax.random.normal(kx2, (1000, num_states), jnp.float32)
    out_big = jax.block_until_ready(dqn_forward(x_big, params))
    ref_big = dqn_reference(x_big, w1, b1, w2, b2)
    assert out_big.shape == (1000, num_actions)
    # Looser tolerance: large-batch path rounds the final Q row to bf16 on
    # writeback (documented numerics deviation).
    assert jnp.allclose(out_big, ref_big, atol=1e-2, rtol=1e-2), float(
        jnp.max(jnp.abs(out_big - ref_big)))

    print("KERNEL_OK")
</pallas_src>

<mosaic_0001>
module attributes {stable_mosaic.version = 11 : i64} {
  func.func @dqn_kernel(%arg0: memref<2x16xf32, #tpu.memory_space<vmem>>, %arg1: memref<16x256xbf16, #tpu.memory_space<vmem>>, %arg2: memref<1x256xf32, #tpu.memory_space<vmem>>, %arg3: memref<256x128xbf16, #tpu.memory_space<vmem>>, %arg4: memref<1x128xf32, #tpu.memory_space<vmem>>, %arg5: memref<2x128xf32, #tpu.memory_space<vmem>>) attributes {dimension_semantics = [], scalar_prefetch = 0 : i64, scratch_operands = 0 : i64, tpu.core_type = #tpu.core_type<tc>} {
    %c0 = arith.constant 0 : index
    %c0_0 = arith.constant 0 : index
    %0 = vector.load %arg0[%c0, %c0_0] : memref<2x16xf32, #tpu.memory_space<vmem>>, vector<2x16xf32>
    %1 = arith.truncf %0 : vector<2x16xf32> to vector<2x16xbf16>
    %c0_1 = arith.constant 0 : index
    %c0_2 = arith.constant 0 : index
    %2 = vector.load %arg1[%c0_1, %c0_2] : memref<16x256xbf16, #tpu.memory_space<vmem>>, vector<16x256xbf16>
    %cst = arith.constant dense<0.000000e+00> : vector<2x256xf32>
    %3 = tpu.matmul %1, %2, %cst {dimension_numbers = #tpu.dot_dimension_numbers<[1], [0], [0], [1], [0, 0, 1, 1], [], []>} : vector<2x16xbf16>, vector<16x256xbf16>, vector<2x256xf32> -> vector<2x256xf32>
    %c0_3 = arith.constant 0 : index
    %c0_4 = arith.constant 0 : index
    %4 = vector.load %arg2[%c0_3, %c0_4] : memref<1x256xf32, #tpu.memory_space<vmem>>, vector<1x256xf32>
    %5 = vector.broadcast %4 : vector<1x256xf32> to vector<2x256xf32>
    %6 = arith.addf %3, %5 : vector<2x256xf32>
    %cst_5 = arith.constant 0.000000e+00 : f32
    %7 = vector.broadcast %cst_5 : f32 to vector<2x256xf32>
    %8 = arith.maximumf %6, %7 : vector<2x256xf32>
    %9 = arith.truncf %8 : vector<2x256xf32> to vector<2x256xbf16>
    %c0_6 = arith.constant 0 : index
    %c0_7 = arith.constant 0 : index
    %10 = vector.load %arg3[%c0_6, %c0_7] : memref<256x128xbf16, #tpu.memory_space<vmem>>, vector<256x128xbf16>
    %cst_8 = arith.constant dense<0.000000e+00> : vector<2x128xf32>
    %11 = tpu.matmul %9, %10, %cst_8 {dimension_numbers = #tpu.dot_dimension_numbers<[1], [0], [0], [1], [0, 0, 1, 1], [], []>} : vector<2x256xbf16>, vector<256x128xbf16>, vector<2x128xf32> -> vector<2x128xf32>
    %c0_9 = arith.constant 0 : index
    %c0_10 = arith.constant 0 : index
    %12 = vector.load %arg4[%c0_9, %c0_10] : memref<1x128xf32, #tpu.memory_space<vmem>>, vector<1x128xf32>
    %13 = vector.broadcast %12 : vector<1x128xf32> to vector<2x128xf32>
    %14 = arith.addf %11, %13 : vector<2x128xf32>
    %c0_11 = arith.constant 0 : index
    %c0_12 = arith.constant 0 : index
    %15 = vector.load %arg5[%c0_11, %c0_12] : memref<2x128xf32, #tpu.memory_space<vmem>>, vector<2x128xf32>
    tpu.vector_store %arg5[%c0_11, %c0_12], %14 {strides = array<i32>} : memref<2x128xf32, #tpu.memory_space<vmem>>, vector<2x128xf32>,
    return
  }
}

</mosaic_0001>

<llo_original>
// kernel: tpu_custom_call.1
$region0: #{tpu_custom_call.1}
  #allocation0 [shape = 'u32[]', space=smem, size = 0x4, offset = 0x4, fixed_abs, tag = 'smem constant byte address 0x4 - core index']
  #allocation1 [shape = 'u32[144,128]{1,0:T(1,128)}', space=vmem, size = 0x12000, scoped, tag = 'internal scratch']
  %s0 = inlined_call_operand.hbm [shape: f32[2,16], index: 0, kind: input, shape index: {}]
  %s1 = inlined_call_operand.hbm [shape: bf16[16,256], index: 1, kind: input, shape index: {}]
  %s2 = inlined_call_operand.vmem [shape: f32[1,256], index: 2, kind: input, shape index: {}]
  %s3 = inlined_call_operand.hbm [shape: bf16[256,128], index: 3, kind: input, shape index: {}]
  %s4 = inlined_call_operand.vmem [shape: f32[1,128], index: 4, kind: input, shape index: {}]
  %s5 = inlined_call_operand.hbm [shape: f32[2,128], index: 5, kind: output, shape index: {}]
  %s6 = sld [smem:[#allocation0]]
  $region42: #{tpu_custom_call.1} parent=0
    _
  %s8 = ssub.s32 1, %s6
  %s9 = scalar_select 0, %s8, %s6
  $region1: #{tpu_custom_call.1} parent=0
    #allocation2 [shape = 'u8[1024]{0}', space=vmem, size = 0x400, scoped, tag = 'input window, operand 0, single buffered']
    #allocation3 [shape = 's32[1]{0}', space=sflag, size = 0x4, scoped, tag = 'scoped memory for tpu_custom_call.1']
    #allocation4 [shape = 's32[1]{0}', space=sflag, size = 0x4, scoped, tag = 'scoped memory for tpu_custom_call.1']
    #allocation5 [shape = 'u8[8192]{0}', space=vmem, size = 0x2000, scoped, tag = 'input window, operand 1, single buffered']
    #allocation6 [shape = 's32[1]{0}', space=sflag, size = 0x4, scoped, tag = 'scoped memory for tpu_custom_call.1']
    #allocation7 [shape = 'u8[65536]{0}', space=vmem, size = 0x10000, scoped, tag = 'input window, operand 3, single buffered']
    #allocation8 [shape = 'u8[1024]{0}', space=vmem, size = 0x400, scoped, tag = 'output window, operand 0, single buffered']
    %10 = vsyncpa [#allocation3], 0
    %11 = vsyncpa [#allocation6], 0
    %12 = vsyncpa [#allocation4], 0
    // Predicated region
    $region2: #{tpu_custom_call.1} parent=1 // pred_check
      _
    $region3: #{tpu_custom_call.1} parent=1 // pred_check_branch
      %14 = sbr.rel (0) target = $region5
    $region4: #{tpu_custom_call.1} parent=1 // pred_region
      %s16 = ssub.s32 32, 32
      %17 = vsyncadd [#allocation3], %s16
      %s19 = sshll.u32 [#allocation2], 4
      %s20 = int_to_ptr.vmem [resolvable:$true] %s19
      %22 = dma.hbm_to_vmem [thread:$0]  %s0, 32, %s20, [#allocation3]
    $region5: #{tpu_custom_call.1} parent=1 // pred_fallthru
      _
    // Predicated region
    $region6: #{tpu_custom_call.1} parent=1 // pred_check
      _
    $region7: #{tpu_custom_call.1} parent=1 // pred_check_branch
      %24 = sbr.rel (0) target = $region9
    $region8: #{tpu_custom_call.1} parent=1 // pred_region
      %s26 = ssub.s32 256, 256
      %27 = vsyncadd [#allocation6], %s26
      %s28 = sshll.u32 [#allocation5], 4
      %s29 = int_to_ptr.vmem [resolvable:$true] %s28
      %34 = dma.hbm_to_vmem [thread:$0]  %s1, 256, %s29, [#allocation6], 128, 128, 8
    $region9: #{tpu_custom_call.1} parent=1 // pred_fallthru
      _
    // Predicated region
    $region10: #{tpu_custom_call.1} parent=1 // pred_check
      _
    $region11: #{tpu_custom_call.1} parent=1 // pred_check_branch
      %36 = sbr.rel (0) target = $region13
    $region12: #{tpu_custom_call.1} parent=1 // pred_region
      _
    $region13: #{tpu_custom_call.1} parent=1 // pred_fallthru
      _
    // Predicated region
    $region14: #{tpu_custom_call.1} parent=1 // pred_check
      _
    $region15: #{tpu_custom_call.1} parent=1 // pred_check_branch
      %38 = sbr.rel (0) target = $region17
    $region16: #{tpu_custom_call.1} parent=1 // pred_region
      %s40 = ssub.s32 2048, 2048
      %41 = vsyncadd [#allocation6], %s40
      %s42 = sshll.u32 [#allocation7], 4
      %s43 = int_to_ptr.vmem [resolvable:$true] %s42
      %48 = dma.hbm_to_vmem [thread:$0]  %s3, 2048, %s43, [#allocation6], 64, 64, 4
    $region17: #{tpu_custom_call.1} parent=1 // pred_fallthru
      _
    // Predicated region
    $region18: #{tpu_custom_call.1} parent=1 // pred_check
      _
    $region19: #{tpu_custom_call.1} parent=1 // pred_check_branch
      %50 = sbr.rel (0) target = $region21
    $region20: #{tpu_custom_call.1} parent=1 // pred_region
      _
    $region21: #{tpu_custom_call.1} parent=1 // pred_fallthru
      _
    // Predicated region
    $region22: #{tpu_custom_call.1} parent=1 // pred_check
      _
    $region23: #{tpu_custom_call.1} parent=1 // pred_check_branch
      %52 = sbr.rel (0) target = $region25
    $region24: #{tpu_custom_call.1} parent=1 // pred_region
      %53 = dma.done [#allocation3], 32
    $region25: #{tpu_custom_call.1} parent=1 // pred_fallthru
      _
    // Predicated region
    $region26: #{tpu_custom_call.1} parent=1 // pred_check
      _
    $region27: #{tpu_custom_call.1} parent=1 // pred_check_branch
      %55 = sbr.rel (0) target = $region29
    $region28: #{tpu_custom_call.1} parent=1 // pred_region
      %56 = dma.done [#allocation6], 256
    $region29: #{tpu_custom_call.1} parent=1 // pred_fallthru
      _
    // Predicated region
    $region30: #{tpu_custom_call.1} parent=1 // pred_check
      _
    $region31: #{tpu_custom_call.1} parent=1 // pred_check_branch
      %58 = sbr.rel (0) target = $region33
    $region32: #{tpu_custom_call.1} parent=1 // pred_region
      %59 = dma.done [#allocation6], 2048
    $region33: #{tpu_custom_call.1} parent=1 // pred_fallthru
      _
    %v61 = vld [vmem:[#allocation2] sm:$0x3]
    %v62 = vpack.c.bf16 %v61, %v61
    %v63 = vld [vmem:[#allocation5] sm:$0xff]
    %v64 = vld [vmem:[#allocation5 + $0x8] sm:$0xff]
    %v65 = vld [vmem:[%s2] sm:$0x3]
    %v67 = vlaneseq
    %v68 = vshrl.u32 %v67, 7
    %v69 = vsub.s32 0, %v68
    %v70 = vrot.slane %v65, %v69
    %v71 = vlaneseq
    %v72 = vshrl.u32 %v71, 7
    %v73 = vsub.s32 1, %v72
    %v74 = vrot.slane %v65, %v73
    %v79 = vunpack.c.l.b16 %v63
    %v80 = vunpack.c.h.b16 %v63
    %v81 = vunpack.c.l.b16 %v64
    %v82 = vunpack.c.h.b16 %v64
    %v83 = vpack.c.b16 %v81, %v79
    %v84 = vpack.c.b16 %v82, %v80
    %vm87 = vcmask 130048
    %v89 = vsel %vm87, %v62, 0
    %91 = vmatprep.subr.bf16.mxu0 %v84
    %92 = vmatpush1.bf16.msra.mxu0 %v83
    %93 = vmatprep.subr.bf16.mxu0 0
    %94 = vmatpush1.bf16.msra.mxu0 0
    %95 = vmatprep.subr.bf16.mxu0 0
    %96 = vmatpush1.bf16.msra.mxu0 0
    %97 = vmatprep.subr.bf16.mxu0 0
    %98 = vmatpush1.bf16.msra.mxu0 0
    %99 = vmatprep.subr.bf16.mxu0 0
    %100 = vmatpush1.bf16.msra.mxu0 0
    %101 = vmatprep.subr.bf16.mxu0 0
    %102 = vmatpush1.bf16.msra.mxu0 0
    %103 = vmatprep.subr.bf16.mxu0 0
    %104 = vmatpush1.bf16.msra.mxu0 0
    %105 = vmatprep.subr.bf16.mxu0 0
    %106 = vmatpush1.bf16.msra.mxu0 0
    %107 = vmatprep.subr.bf16.mxu0 0
    %108 = vmatpush1.bf16.msra.mxu0 0
    %109 = vmatprep.subr.bf16.mxu0 0
    %110 = vmatpush1.bf16.msra.mxu0 0
    %111 = vmatprep.subr.bf16.mxu0 0
    %112 = vmatpush1.bf16.msra.mxu0 0
    %113 = vmatprep.subr.bf16.mxu0 0
    %114 = vmatpush1.bf16.msra.mxu0 0
    %115 = vmatprep.subr.bf16.mxu0 0
    %116 = vmatpush1.bf16.msra.mxu0 0
    %117 = vmatprep.subr.bf16.mxu0 0
    %118 = vmatpush1.bf16.msra.mxu0 0
    %119 = vmatprep.subr.bf16.mxu0 0
    %120 = vmatpush1.bf16.msra.mxu0 0
    %121 = vmatprep.subr.bf16.mxu0 0
    %122 = vmatpush1.bf16.msra.mxu0 0
    %123 = vmatprep.mubr.bf16.mxu0 0
    %124 = vmatmul.mubr.bf16.gmra.mrb[0].mxu0 %v89
    %v125 = vpop.f32.mrb[0].mxu0
    %v126 = vadd.f32 %v70, %v125
    %v127 = vpop.f32.mrb[0].mxu0
    %v128 = vadd.f32 %v74, %v127
    %v129 = vpop.f32.mrb[0].mxu0
    %v130 = vpop.f32.mrb[0].mxu0
    %131 = vdwg.mxu0
    %v132 = vmax.f32 %v126, 0.0
    %v133 = vmax.f32 %v128, 0.0
    %v134 = vpack.c.bf16 %v132, %v132
    %v135 = vpack.c.bf16 %v133, %v133
    %v136 = vld [vmem:[#allocation7] sm:$0xf]
    %v137 = vld [vmem:[#allocation7 + $0x4] sm:$0xf]
    %v138 = vld [vmem:[#allocation7 + $0x8] sm:$0xf]
    %v139 = vld [vmem:[#allocation7 + $0xc] sm:$0xf]
    %v140 = vld [vmem:[#allocation7 + $0x10] sm:$0xf]
    %v141 = vld [vmem:[#allocation7 + $0x14] sm:$0xf]
    %v142 = vld [vmem:[#allocation7 + $0x18] sm:$0xf]
    %v143 = vld [vmem:[#allocation7 + $0x1c] sm:$0xf]
    %v144 = vld [vmem:[#allocation7 + $0x20] sm:$0xf]
    %v145 = vld [vmem:[#allocation7 + $0x24] sm:$0xf]
    %v146 = vld [vmem:[#allocation7 + $0x28] sm:$0xf]
    %v147 = vld [vmem:[#allocation7 + $0x2c] sm:$0xf]
    %v148 = vld [vmem:[#allocation7 + $0x30] sm:$0xf]
    %v149 = vld [vmem:[#allocation7 + $0x34] sm:$0xf]
    %v150 = vld [vmem:[#allocation7 + $0x38] sm:$0xf]
    %v151 = vld [vmem:[#allocation7 + $0x3c] sm:$0xf]
    %v152 = vld [vmem:[#allocation7 + $0x40] sm:$0xf]
    %v153 = vld [vmem:[#allocation7 + $0x44] sm:$0xf]
    %v154 = vld [vmem:[#allocation7 + $0x48] sm:$0xf]
    %v155 = vld [vmem:[#allocation7 + $0x4c] sm:$0xf]
    %v156 = vld [vmem:[#allocation7 + $0x50] sm:$0xf]
    %v157 = vld [vmem:[#allocation7 + $0x54] sm:$0xf]
    %v158 = vld [vmem:[#allocation7 + $0x58] sm:$0xf]
    %v159 = vld [vmem:[#allocation7 + $0x5c] sm:$0xf]
    %v160 = vld [vmem:[#allocation7 + $0x60] sm:$0xf]
    %v161 = vld [vmem:[#allocation7 + $0x64] sm:$0xf]
    %v162 = vld [vmem:[#allocation7 + $0x68] sm:$0xf]
    %v163 = vld [vmem:[#allocation7 + $0x6c] sm:$0xf]
    %v164 = vld [vmem:[#allocation7 + $0x70] sm:$0xf]
    %v165 = vld [vmem:[#allocation7 + $0x74] sm:$0xf]
    %v166 = vld [vmem:[#allocation7 + $0x78] sm:$0xf]
    %v167 = vld [vmem:[#allocation7 + $0x7c] sm:$0xf]
    %v168 = vld [vmem:[%s4] sm:$0x1]
    %v170 = vlaneseq
    %v171 = vshrl.u32 %v170, 7
    %v172 = vsub.s32 0, %v171
    %v173 = vrot.slane %v168, %v172
    %v207 = vunpack.c.l.b16 %v136
    %v208 = vunpack.c.l.b16 %v137
    %v209 = vunpack.c.l.b16 %v138
    %v210 = vunpack.c.l.b16 %v139
    %v211 = vunpack.c.l.b16 %v140
    %v212 = vunpack.c.l.b16 %v141
    %v213 = vunpack.c.l.b16 %v142
    %v214 = vunpack.c.l.b16 %v143
    %v215 = vunpack.c.l.b16 %v144
    %v216 = vunpack.c.l.b16 %v145
    %v217 = vunpack.c.l.b16 %v146
    %v218 = vunpack.c.l.b16 %v147
    %v219 = vunpack.c.l.b16 %v148
    %v220 = vunpack.c.l.b16 %v149
    %v221 = vunpack.c.l.b16 %v150
    %v222 = vunpack.c.l.b16 %v151
    %v223 = vunpack.c.l.b16 %v152
    %v224 = vunpack.c.l.b16 %v153
    %v225 = vunpack.c.l.b16 %v154
    %v226 = vunpack.c.l.b16 %v155
    %v227 = vunpack.c.l.b16 %v156
    %v228 = vunpack.c.l.b16 %v157
    %v229 = vunpack.c.l.b16 %v158
    %v230 = vunpack.c.l.b16 %v159
    %v231 = vunpack.c.l.b16 %v160
    %v232 = vunpack.c.l.b16 %v161
    %v233 = vunpack.c.l.b16 %v162
    %v234 = vunpack.c.l.b16 %v163
    %v235 = vunpack.c.l.b16 %v164
    %v236 = vunpack.c.l.b16 %v165
    %v237 = vunpack.c.l.b16 %v166
    %v238 = vunpack.c.l.b16 %v167
    %v239 = vpack.c.b16 %v208, %v207
    %v240 = vpack.c.b16 %v210, %v209
    %v241 = vpack.c.b16 %v212, %v211
    %v242 = vpack.c.b16 %v214, %v213
    %v243 = vpack.c.b16 %v216, %v215
    %v244 = vpack.c.b16 %v218, %v217
    %v245 = vpack.c.b16 %v220, %v219
    %v246 = vpack.c.b16 %v222, %v221
    %v247 = vpack.c.b16 %v224, %v223
    %v248 = vpack.c.b16 %v226, %v225
    %v249 = vpack.c.b16 %v228, %v227
    %v250 = vpack.c.b16 %v230, %v229
    %v251 = vpack.c.b16 %v232, %v231
    %v252 = vpack.c.b16 %v234, %v233
    %v253 = vpack.c.b16 %v236, %v235
    %v254 = vpack.c.b16 %v238, %v237
    %271 = vmatprep.subr.bf16.mxu0 0
    %272 = vmatpush1.bf16.msra.mxu0 %v239
    %273 = vmatprep.subr.bf16.mxu0 0
    %274 = vmatpush1.bf16.msra.mxu0 %v240
    %275 = vmatprep.subr.bf16.mxu0 0
    %276 = vmatpush1.bf16.msra.mxu0 %v241
    %277 = vmatprep.subr.bf16.mxu0 0
    %278 = vmatpush1.bf16.msra.mxu0 %v242
    %279 = vmatprep.subr.bf16.mxu0 0
    %280 = vmatpush1.bf16.msra.mxu0 %v243
    %281 = vmatprep.subr.bf16.mxu0 0
    %282 = vmatpush1.bf16.msra.mxu0 %v244
    %283 = vmatprep.subr.bf16.mxu0 0
    %284 = vmatpush1.bf16.msra.mxu0 %v245
    %285 = vmatprep.subr.bf16.mxu0 0
    %286 = vmatpush1.bf16.msra.mxu0 %v246
    %287 = vmatprep.subr.bf16.mxu0 0
    %288 = vmatpush1.bf16.msra.mxu0 %v247
    %289 = vmatprep.subr.bf16.mxu0 0
    %290 = vmatpush1.bf16.msra.mxu0 %v248
    %291 = vmatprep.subr.bf16.mxu0 0
    %292 = vmatpush1.bf16.msra.mxu0 %v249
    %293 = vmatprep.subr.bf16.mxu0 0
    %294 = vmatpush1.bf16.msra.mxu0 %v250
    %295 = vmatprep.subr.bf16.mxu0 0
    %296 = vmatpush1.bf16.msra.mxu0 %v251
    %297 = vmatprep.subr.bf16.mxu0 0
    %298 = vmatpush1.bf16.msra.mxu0 %v252
    %299 = vmatprep.subr.bf16.mxu0 0
    %300 = vmatpush1.bf16.msra.mxu0 %v253
    %301 = vmatprep.subr.bf16.mxu0 0
    %302 = vmatpush1.bf16.msra.mxu0 %v254
    %303 = vmatprep.mubr.bf16.mxu0 %v135
    %304 = vmatmul.mubr.bf16.gmra.mrb[0].mxu0 %v134
    %v305 = vpop.f32.mrb[0].mxu0
    %v306 = vadd.f32 %v173, %v305
    %v307 = vpop.f32.mrb[0].mxu0
    %v308 = vpop.f32.mrb[0].mxu0
    %v309 = vpop.f32.mrb[0].mxu0
    %310 = vdwg.mxu0
    %311 = vst [vmem:[#allocation8] sm:$0x3] %v306
    // Predicated region
    $region34: #{tpu_custom_call.1} parent=1 // pred_check
      _
    $region35: #{tpu_custom_call.1} parent=1 // pred_check_branch
      %313 = sbr.rel (0) target = $region37
    $region36: #{tpu_custom_call.1} parent=1 // pred_region
      %s315 = ssub.s32 32, 32
      %316 = vsyncadd [#allocation4], %s315
      %s318 = sshll.u32 [#allocation8], 4
      %s319 = int_to_ptr.vmem [resolvable:$true] %s318
      %321 = dma.vmem_to_hbm [thread:$0]  %s319, 32, %s5, [#allocation4]
    $region37: #{tpu_custom_call.1} parent=1 // pred_fallthru
      _
    // Predicated region
    $region38: #{tpu_custom_call.1} parent=1 // pred_check
      _
    $region39: #{tpu_custom_call.1} parent=1 // pred_check_branch
      %323 = sbr.rel (0) target = $region41
    $region40: #{tpu_custom_call.1} parent=1 // pred_region
      %324 = dma.done [#allocation4], 32
    $region41: #{tpu_custom_call.1} parent=1 // pred_fallthru
      _
    %325 = vsyncpa [#allocation3], 1
    %326 = vsyncpa [#allocation6], 1
    %327 = vsyncpa [#allocation4], 1

</llo_original>
